<compile_context>
chip_gen: v7x
topology: tpu7x:2x2x1
jax: 0.10.0
libtpu: 0.0.40
codegen_flags: <defaults>
</compile_context>

<pallas_src>
import functools

import jax
import jax.numpy as jnp
from jax.experimental import pallas as pl
from jax.experimental.pallas import tpu as pltpu


# ----------------------------- Pallas kernel --------------------------------
def lstm2_kernel(x_ref, wih0_ext_ref, w_comb_ref, bias_ext_ref, out_ref, *, T, B):
    """Two-layer LSTM recurrence (skew-fused); writes hn[-1] = h1(T-1).

    x_ref        : (B*T, I)  batch-major rows (row = b*T + t), free reshape of input
    wih0_ext_ref : (I, 8H)   layer-0 input weights at even gate blocks, zeros at odd
    w_comb_ref   : (2H, 8H)  fused recurrent weights:
                             rows 0:H  (h0(t))  : even block k = W_hh0[k].T, odd = W_ih1[k].T
                             rows H:2H (h1(t-1)): even block   = 0,          odd = W_hh1[k].T
    bias_ext_ref : (1, 8H)   even block k = (b_ih0+b_hh0) gate k, odd = (b_ih1+b_hh1) gate k
    out_ref      : (B, H)

    Combined gate-block order (blocks of H lanes): [i0,i1,f0,f1,g0,g1,o0,o1], so
    sigmoid/tanh slices at 2H granularity directly yield packed [layer0|layer1] gates.
    """
    H2 = w_comb_ref.shape[0]          # 2H
    H = H2 // 2

    # Hoisted input projection over the whole sequence (one MXU matmul); layer-0
    # bias folded in (even blocks), layer-1 bias pre-placed (odd blocks).
    xw = (jnp.dot(x_ref[...], wih0_ext_ref[...],
                  preferred_element_type=jnp.float32)
          + bias_ext_ref[...])                                    # (B*T, 8H)

    w_comb = w_comb_ref[...]

    # Per-time-step addend rows (B, 8H): even blocks = layer-0 pre-gates at time s,
    # odd blocks = layer-1 bias. Depends only on x -> off the recurrent chain.
    def time_rows(s):
        return jnp.concatenate(
            [xw[b * T + s: b * T + s + 1, :] for b in range(B)], axis=0)
    addend = [time_rows(s) for s in range(T)]

    def step(gates, c_pk):
        # One sigmoid push + one tanh push over the whole (B, 8H) gates slab.
        sig = jax.nn.sigmoid(gates)
        th = jnp.tanh(gates)
        i_pk = sig[:, 0 * H2:1 * H2]       # [i0 | i1]
        f_pk = sig[:, 1 * H2:2 * H2]       # [f0 | f1]
        g_pk = th[:, 2 * H2:3 * H2]        # [g0 | g1]
        o_pk = sig[:, 3 * H2:4 * H2]       # [o0 | o1]
        c_new = f_pk * c_pk + i_pk * g_pk
        h_new = o_pk * jnp.tanh(c_new)
        return h_new, c_new

    # Prologue ("iteration -1"): all state is zero, so the gates are just addend[0];
    # keep only the layer-0 half (h0(0), c0(0)) and start layer-1 state at zero.
    lane = jax.lax.broadcasted_iota(jnp.int32, (B, H2), 1)
    l0_mask = (lane < H).astype(jnp.float32)
    h_pk, c_pk = step(addend[0], jnp.zeros((B, H2), jnp.float32))
    h_pk = h_pk * l0_mask
    c_pk = c_pk * l0_mask

    # Skewed recurrence, fully unrolled (T small & static): iteration t consumes
    # packed [h0(t), h1(t-1)] / [c0(t), c1(t-1)] and produces [h0(t+1), h1(t)] /
    # [c0(t+1), c1(t)] with ONE MXU push and one sigmoid/tanh pair.
    for t in range(T):
        # Last iteration: the layer-0 half of the addend is unused (h0(T) is
        # discarded); any valid time's rows work since odd blocks are all b1.
        a_t = addend[t + 1] if t + 1 < T else addend[0]
        gates = jnp.dot(h_pk, w_comb, preferred_element_type=jnp.float32) + a_t
        h_pk, c_pk = step(gates, c_pk)

    out_ref[...] = h_pk[:, H:H2].astype(out_ref.dtype)     # h1(T-1) = hn[-1]


# ----------------------------- parameter prep --------------------------------
def init_motion_extractor_params(key, num_axis=3, num_landmarks=16,
                                 hidden_size=32, num_layers=2):
    """Deterministic synthetic parameters matching nn.LSTM's shapes.

    PyTorch layer l: weight_ih_l{l} (4H, in), weight_hh_l{l} (4H, H),
                     bias_ih_l{l} (4H,), bias_hh_l{l} (4H,). Gate order [i, f, g, o].
    """
    I = num_axis * num_landmarks
    H = hidden_size
    bound = 1.0 / jnp.sqrt(jnp.float32(H))
    params = []
    for layer in range(num_layers):
        in_dim = I if layer == 0 else H
        key, k1, k2, k3, k4 = jax.random.split(key, 5)
        w_ih = jax.random.uniform(k1, (4 * H, in_dim), jnp.float32, -bound, bound)
        w_hh = jax.random.uniform(k2, (4 * H, H), jnp.float32, -bound, bound)
        b_ih = jax.random.uniform(k3, (4 * H,), jnp.float32, -bound, bound)
        b_hh = jax.random.uniform(k4, (4 * H,), jnp.float32, -bound, bound)
        params.append((w_ih, w_hh, b_ih, b_hh))
    return params


def prepare_kernel_params(params):
    """One-time weight prep: transposes, gate-block interleaving, skew fusion,
    bias folding.  Done outside the per-call forward path."""
    (w_ih0, w_hh0, b_ih0, b_hh0), (w_ih1, w_hh1, b_ih1, b_hh1) = params
    H = w_hh0.shape[1]
    I = w_ih0.shape[1]

    def split_cols(m):  # (R, 4H) -> 4 blocks (R, H), gate order [i, f, g, o]
        return [m[:, k * H:(k + 1) * H] for k in range(4)]

    g0 = split_cols(w_ih0.T)   # layer-0 input weights per gate  (I, H)
    r0 = split_cols(w_hh0.T)   # layer-0 recurrent weights       (H, H)
    g1 = split_cols(w_ih1.T)   # layer-1 "input" (h0) weights    (H, H)
    r1 = split_cols(w_hh1.T)   # layer-1 recurrent (h1) weights  (H, H)

    zI = jnp.zeros((I, H), jnp.float32)
    zH = jnp.zeros((H, H), jnp.float32)

    # Combined column-block order: [i0,i1,f0,f1,g0,g1,o0,o1]  (blocks of H lanes).
    wih0_ext = jnp.concatenate(
        [blk for k in range(4) for blk in (g0[k], zI)], axis=1).astype(jnp.float32)   # (I, 8H)

    top = jnp.concatenate([blk for k in range(4) for blk in (r0[k], g1[k])], axis=1)  # (H, 8H)
    bot = jnp.concatenate([blk for k in range(4) for blk in (zH, r1[k])], axis=1)     # (H, 8H)
    w_comb = jnp.concatenate([top, bot], axis=0).astype(jnp.float32)                  # (2H, 8H)

    b0 = b_ih0 + b_hh0
    b1 = b_ih1 + b_hh1
    bias_ext = jnp.concatenate(
        [blk for k in range(4) for blk in (b0[k * H:(k + 1) * H], b1[k * H:(k + 1) * H])],
        axis=0).reshape(1, 8 * H).astype(jnp.float32)                                 # (1, 8H)

    return wih0_ext, w_comb, bias_ext


# ----------------------------- Python wrapper --------------------------------
@jax.jit
def motion_extractor_forward(x, kparams):
    """x: (B, F, L, A) for face=True, or (B, F, I). Returns hn[-1]: (B, H)."""
    if x.ndim == 4:                       # face=True path: flatten landmarks*axis
        B, F = x.shape[0], x.shape[1]
        x = x.reshape(B, F, -1)
    B, T, I = x.shape
    wih0_ext, w_comb, bias_ext = kparams
    H = w_comb.shape[0] // 2

    # Free, layout-preserving flatten (no transpose, no extra XLA copy): rows are
    # batch-major (row = b*T + t); the kernel does the time indexing internally.
    x_bm = x.reshape(B * T, I).astype(jnp.float32)

    vmem = pl.BlockSpec(memory_space=pltpu.MemorySpace.VMEM)
    kernel = functools.partial(lstm2_kernel, T=T, B=B)
    return pl.pallas_call(
        kernel,
        out_shape=jax.ShapeDtypeStruct((B, H), jnp.float32),
        in_specs=[vmem] * 4,
        out_specs=vmem,
    )(x_bm, wih0_ext, w_comb, bias_ext)


# ----------------------------- reference (pure JAX) --------------------------
def _reference_forward(x, params, face=True):
    if face:
        B, F = x.shape[0], x.shape[1]
        x = x.reshape(B, F, -1)
    B, T, _ = x.shape
    H = params[0][1].shape[1]
    layer_in = x.astype(jnp.float32)
    h_last = None
    for (w_ih, w_hh, b_ih, b_hh) in params:
        h = jnp.zeros((B, H), jnp.float32)
        c = jnp.zeros((B, H), jnp.float32)
        outs = []
        for t in range(T):
            g = layer_in[:, t, :] @ w_ih.T + h @ w_hh.T + b_ih + b_hh
            i = jax.nn.sigmoid(g[:, 0 * H:1 * H])
            f = jax.nn.sigmoid(g[:, 1 * H:2 * H])
            gg = jnp.tanh(g[:, 2 * H:3 * H])
            o = jax.nn.sigmoid(g[:, 3 * H:4 * H])
            c = f * c + i * gg
            h = o * jnp.tanh(c)
            outs.append(h)
        layer_in = jnp.stack(outs, axis=1)
        h_last = h
    return h_last


# ------------------------------------ main -----------------------------------
if __name__ == "__main__":
    # Small shapes consistent with the module: B=2, F(seq)=8, landmarks=16, axis=3,
    # hidden=32, num_layers=2  ->  x: (2, 8, 16, 3), output: (2, 32)
    num_axis, num_landmarks, hidden_size, num_layers = 3, 16, 32, 2
    B, F = 2, 8

    key = jax.random.PRNGKey(0)
    key, kx = jax.random.split(key)
    x = jax.random.normal(kx, (B, F, num_landmarks, num_axis), jnp.float32)

    params = init_motion_extractor_params(
        key, num_axis=num_axis, num_landmarks=num_landmarks,
        hidden_size=hidden_size, num_layers=num_layers)
    kparams = prepare_kernel_params(params)   # one-time weight prep

    out = motion_extractor_forward(x, kparams)
    out = jax.block_until_ready(out)

    ref = _reference_forward(x, params, face=True)
    assert out.shape == (B, hidden_size)
    assert jnp.allclose(out, ref, atol=1e-4, rtol=1e-4), "mismatch vs reference"

    print("KERNEL_OK")
</pallas_src>

<mosaic_0001>
module attributes {stable_mosaic.version = 11 : i64} {
  func.func @lstm2_kernel(%arg0: memref<16x48xf32, #tpu.memory_space<vmem>>, %arg1: memref<48x256xf32, #tpu.memory_space<vmem>>, %arg2: memref<64x256xf32, #tpu.memory_space<vmem>>, %arg3: memref<1x256xf32, #tpu.memory_space<vmem>>, %arg4: memref<2x32xf32, #tpu.memory_space<vmem>>) attributes {dimension_semantics = [], scalar_prefetch = 0 : i64, scratch_operands = 0 : i64, tpu.core_type = #tpu.core_type<tc>} {
    %c0 = arith.constant 0 : index
    %c0_0 = arith.constant 0 : index
    %0 = vector.load %arg0[%c0, %c0_0] : memref<16x48xf32, #tpu.memory_space<vmem>>, vector<16x48xf32>
    %c0_1 = arith.constant 0 : index
    %c0_2 = arith.constant 0 : index
    %1 = vector.load %arg1[%c0_1, %c0_2] : memref<48x256xf32, #tpu.memory_space<vmem>>, vector<48x256xf32>
    %cst = arith.constant dense<0.000000e+00> : vector<16x256xf32>
    %2 = tpu.matmul %0, %1, %cst {dimension_numbers = #tpu.dot_dimension_numbers<[1], [0], [0], [1], [0, 0, 1, 1], [], []>} : vector<16x48xf32>, vector<48x256xf32>, vector<16x256xf32> -> vector<16x256xf32>
    %c0_3 = arith.constant 0 : index
    %c0_4 = arith.constant 0 : index
    %3 = vector.load %arg3[%c0_3, %c0_4] : memref<1x256xf32, #tpu.memory_space<vmem>>, vector<1x256xf32>
    %4 = vector.broadcast %3 : vector<1x256xf32> to vector<16x256xf32>
    %5 = arith.addf %2, %4 : vector<16x256xf32>
    %c0_5 = arith.constant 0 : index
    %c0_6 = arith.constant 0 : index
    %6 = vector.load %arg2[%c0_5, %c0_6] : memref<64x256xf32, #tpu.memory_space<vmem>>, vector<64x256xf32>
    %7 = vector.extract_strided_slice %5 {offsets = [0, 0], sizes = [1, 256], strides = [1, 1]} : vector<16x256xf32> to vector<1x256xf32>
    %8 = vector.extract_strided_slice %5 {offsets = [8, 0], sizes = [1, 256], strides = [1, 1]} : vector<16x256xf32> to vector<1x256xf32>
    %9 = tpu.concatenate %7, %8 in 0 : vector<1x256xf32>, vector<1x256xf32> -> vector<2x256xf32>
    %10 = vector.extract_strided_slice %5 {offsets = [1, 0], sizes = [1, 256], strides = [1, 1]} : vector<16x256xf32> to vector<1x256xf32>
    %11 = vector.extract_strided_slice %5 {offsets = [9, 0], sizes = [1, 256], strides = [1, 1]} : vector<16x256xf32> to vector<1x256xf32>
    %12 = tpu.concatenate %10, %11 in 0 : vector<1x256xf32>, vector<1x256xf32> -> vector<2x256xf32>
    %13 = vector.extract_strided_slice %5 {offsets = [2, 0], sizes = [1, 256], strides = [1, 1]} : vector<16x256xf32> to vector<1x256xf32>
    %14 = vector.extract_strided_slice %5 {offsets = [10, 0], sizes = [1, 256], strides = [1, 1]} : vector<16x256xf32> to vector<1x256xf32>
    %15 = tpu.concatenate %13, %14 in 0 : vector<1x256xf32>, vector<1x256xf32> -> vector<2x256xf32>
    %16 = vector.extract_strided_slice %5 {offsets = [3, 0], sizes = [1, 256], strides = [1, 1]} : vector<16x256xf32> to vector<1x256xf32>
    %17 = vector.extract_strided_slice %5 {offsets = [11, 0], sizes = [1, 256], strides = [1, 1]} : vector<16x256xf32> to vector<1x256xf32>
    %18 = tpu.concatenate %16, %17 in 0 : vector<1x256xf32>, vector<1x256xf32> -> vector<2x256xf32>
    %19 = vector.extract_strided_slice %5 {offsets = [4, 0], sizes = [1, 256], strides = [1, 1]} : vector<16x256xf32> to vector<1x256xf32>
    %20 = vector.extract_strided_slice %5 {offsets = [12, 0], sizes = [1, 256], strides = [1, 1]} : vector<16x256xf32> to vector<1x256xf32>
    %21 = tpu.concatenate %19, %20 in 0 : vector<1x256xf32>, vector<1x256xf32> -> vector<2x256xf32>
    %22 = vector.extract_strided_slice %5 {offsets = [5, 0], sizes = [1, 256], strides = [1, 1]} : vector<16x256xf32> to vector<1x256xf32>
    %23 = vector.extract_strided_slice %5 {offsets = [13, 0], sizes = [1, 256], strides = [1, 1]} : vector<16x256xf32> to vector<1x256xf32>
    %24 = tpu.concatenate %22, %23 in 0 : vector<1x256xf32>, vector<1x256xf32> -> vector<2x256xf32>
    %25 = vector.extract_strided_slice %5 {offsets = [6, 0], sizes = [1, 256], strides = [1, 1]} : vector<16x256xf32> to vector<1x256xf32>
    %26 = vector.extract_strided_slice %5 {offsets = [14, 0], sizes = [1, 256], strides = [1, 1]} : vector<16x256xf32> to vector<1x256xf32>
    %27 = tpu.concatenate %25, %26 in 0 : vector<1x256xf32>, vector<1x256xf32> -> vector<2x256xf32>
    %28 = vector.extract_strided_slice %5 {offsets = [7, 0], sizes = [1, 256], strides = [1, 1]} : vector<16x256xf32> to vector<1x256xf32>
    %29 = vector.extract_strided_slice %5 {offsets = [15, 0], sizes = [1, 256], strides = [1, 1]} : vector<16x256xf32> to vector<1x256xf32>
    %30 = tpu.concatenate %28, %29 in 0 : vector<1x256xf32>, vector<1x256xf32> -> vector<2x256xf32>
    %31 = tpu.iota {dimensions = array<i32: 1>} : vector<2x64xi32>
    %c32_i32 = arith.constant 32 : i32
    %32 = vector.broadcast %c32_i32 : i32 to vector<2x64xi32>
    %33 = arith.cmpi slt, %31, %32 : vector<2x64xi32>
    %34 = arith.extui %33 : vector<2x64xi1> to vector<2x64xi32>
    %35 = arith.sitofp %34 : vector<2x64xi32> to vector<2x64xf32>
    %cst_7 = arith.constant 0.000000e+00 : f32
    %36 = vector.broadcast %cst_7 : f32 to vector<2x64xf32>
    %37 = arith.negf %9 : vector<2x256xf32>
    %38 = math.exp %37 : vector<2x256xf32>
    %cst_8 = arith.constant 1.000000e+00 : f32
    %39 = vector.broadcast %cst_8 : f32 to vector<2x256xf32>
    %40 = arith.addf %39, %38 : vector<2x256xf32>
    %41 = arith.divf %39, %40 : vector<2x256xf32>
    %42 = math.tanh %9 : vector<2x256xf32>
    %43 = vector.extract_strided_slice %41 {offsets = [0, 0], sizes = [2, 64], strides = [1, 1]} : vector<2x256xf32> to vector<2x64xf32>
    %44 = vector.extract_strided_slice %41 {offsets = [0, 64], sizes = [2, 64], strides = [1, 1]} : vector<2x256xf32> to vector<2x64xf32>
    %45 = vector.extract_strided_slice %42 {offsets = [0, 128], sizes = [2, 64], strides = [1, 1]} : vector<2x256xf32> to vector<2x64xf32>
    %46 = vector.extract_strided_slice %41 {offsets = [0, 192], sizes = [2, 64], strides = [1, 1]} : vector<2x256xf32> to vector<2x64xf32>
    %47 = arith.mulf %44, %36 : vector<2x64xf32>
    %48 = arith.mulf %43, %45 : vector<2x64xf32>
    %49 = arith.addf %47, %48 : vector<2x64xf32>
    %50 = math.tanh %49 : vector<2x64xf32>
    %51 = arith.mulf %46, %50 : vector<2x64xf32>
    %52 = arith.mulf %51, %35 : vector<2x64xf32>
    %53 = arith.mulf %49, %35 : vector<2x64xf32>
    %cst_9 = arith.constant dense<0.000000e+00> : vector<2x256xf32>
    %54 = tpu.matmul %52, %6, %cst_9 {dimension_numbers = #tpu.dot_dimension_numbers<[1], [0], [0], [1], [0, 0, 1, 1], [], []>} : vector<2x64xf32>, vector<64x256xf32>, vector<2x256xf32> -> vector<2x256xf32>
    %55 = arith.addf %54, %12 : vector<2x256xf32>
    %56 = arith.negf %55 : vector<2x256xf32>
    %57 = math.exp %56 : vector<2x256xf32>
    %cst_10 = arith.constant 1.000000e+00 : f32
    %58 = vector.broadcast %cst_10 : f32 to vector<2x256xf32>
    %59 = arith.addf %58, %57 : vector<2x256xf32>
    %60 = arith.divf %58, %59 : vector<2x256xf32>
    %61 = math.tanh %55 : vector<2x256xf32>
    %62 = vector.extract_strided_slice %60 {offsets = [0, 0], sizes = [2, 64], strides = [1, 1]} : vector<2x256xf32> to vector<2x64xf32>
    %63 = vector.extract_strided_slice %60 {offsets = [0, 64], sizes = [2, 64], strides = [1, 1]} : vector<2x256xf32> to vector<2x64xf32>
    %64 = vector.extract_strided_slice %61 {offsets = [0, 128], sizes = [2, 64], strides = [1, 1]} : vector<2x256xf32> to vector<2x64xf32>
    %65 = vector.extract_strided_slice %60 {offsets = [0, 192], sizes = [2, 64], strides = [1, 1]} : vector<2x256xf32> to vector<2x64xf32>
    %66 = arith.mulf %63, %53 : vector<2x64xf32>
    %67 = arith.mulf %62, %64 : vector<2x64xf32>
    %68 = arith.addf %66, %67 : vector<2x64xf32>
    %69 = math.tanh %68 : vector<2x64xf32>
    %70 = arith.mulf %65, %69 : vector<2x64xf32>
    %cst_11 = arith.constant dense<0.000000e+00> : vector<2x256xf32>
    %71 = tpu.matmul %70, %6, %cst_11 {dimension_numbers = #tpu.dot_dimension_numbers<[1], [0], [0], [1], [0, 0, 1, 1], [], []>} : vector<2x64xf32>, vector<64x256xf32>, vector<2x256xf32> -> vector<2x256xf32>
    %72 = arith.addf %71, %15 : vector<2x256xf32>
    %73 = arith.negf %72 : vector<2x256xf32>
    %74 = math.exp %73 : vector<2x256xf32>
    %cst_12 = arith.constant 1.000000e+00 : f32
    %75 = vector.broadcast %cst_12 : f32 to vector<2x256xf32>
    %76 = arith.addf %75, %74 : vector<2x256xf32>
    %77 = arith.divf %75, %76 : vector<2x256xf32>
    %78 = math.tanh %72 : vector<2x256xf32>
    %79 = vector.extract_strided_slice %77 {offsets = [0, 0], sizes = [2, 64], strides = [1, 1]} : vector<2x256xf32> to vector<2x64xf32>
    %80 = vector.extract_strided_slice %77 {offsets = [0, 64], sizes = [2, 64], strides = [1, 1]} : vector<2x256xf32> to vector<2x64xf32>
    %81 = vector.extract_strided_slice %78 {offsets = [0, 128], sizes = [2, 64], strides = [1, 1]} : vector<2x256xf32> to vector<2x64xf32>
    %82 = vector.extract_strided_slice %77 {offsets = [0, 192], sizes = [2, 64], strides = [1, 1]} : vector<2x256xf32> to vector<2x64xf32>
    %83 = arith.mulf %80, %68 : vector<2x64xf32>
    %84 = arith.mulf %79, %81 : vector<2x64xf32>
    %85 = arith.addf %83, %84 : vector<2x64xf32>
    %86 = math.tanh %85 : vector<2x64xf32>
    %87 = arith.mulf %82, %86 : vector<2x64xf32>
    %cst_13 = arith.constant dense<0.000000e+00> : vector<2x256xf32>
    %88 = tpu.matmul %87, %6, %cst_13 {dimension_numbers = #tpu.dot_dimension_numbers<[1], [0], [0], [1], [0, 0, 1, 1], [], []>} : vector<2x64xf32>, vector<64x256xf32>, vector<2x256xf32> -> vector<2x256xf32>
    %89 = arith.addf %88, %18 : vector<2x256xf32>
    %90 = arith.negf %89 : vector<2x256xf32>
    %91 = math.exp %90 : vector<2x256xf32>
    %cst_14 = arith.constant 1.000000e+00 : f32
    %92 = vector.broadcast %cst_14 : f32 to vector<2x256xf32>
    %93 = arith.addf %92, %91 : vector<2x256xf32>
    %94 = arith.divf %92, %93 : vector<2x256xf32>
    %95 = math.tanh %89 : vector<2x256xf32>
    %96 = vector.extract_strided_slice %94 {offsets = [0, 0], sizes = [2, 64], strides = [1, 1]} : vector<2x256xf32> to vector<2x64xf32>
    %97 = vector.extract_strided_slice %94 {offsets = [0, 64], sizes = [2, 64], strides = [1, 1]} : vector<2x256xf32> to vector<2x64xf32>
    %98 = vector.extract_strided_slice %95 {offsets = [0, 128], sizes = [2, 64], strides = [1, 1]} : vector<2x256xf32> to vector<2x64xf32>
    %99 = vector.extract_strided_slice %94 {offsets = [0, 192], sizes = [2, 64], strides = [1, 1]} : vector<2x256xf32> to vector<2x64xf32>
    %100 = arith.mulf %97, %85 : vector<2x64xf32>
    %101 = arith.mulf %96, %98 : vector<2x64xf32>
    %102 = arith.addf %100, %101 : vector<2x64xf32>
    %103 = math.tanh %102 : vector<2x64xf32>
    %104 = arith.mulf %99, %103 : vector<2x64xf32>
    %cst_15 = arith.constant dense<0.000000e+00> : vector<2x256xf32>
    %105 = tpu.matmul %104, %6, %cst_15 {dimension_numbers = #tpu.dot_dimension_numbers<[1], [0], [0], [1], [0, 0, 1, 1], [], []>} : vector<2x64xf32>, vector<64x256xf32>, vector<2x256xf32> -> vector<2x256xf32>
    %106 = arith.addf %105, %21 : vector<2x256xf32>
    %107 = arith.negf %106 : vector<2x256xf32>
    %108 = math.exp %107 : vector<2x256xf32>
    %cst_16 = arith.constant 1.000000e+00 : f32
    %109 = vector.broadcast %cst_16 : f32 to vector<2x256xf32>
    %110 = arith.addf %109, %108 : vector<2x256xf32>
    %111 = arith.divf %109, %110 : vector<2x256xf32>
    %112 = math.tanh %106 : vector<2x256xf32>
    %113 = vector.extract_strided_slice %111 {offsets = [0, 0], sizes = [2, 64], strides = [1, 1]} : vector<2x256xf32> to vector<2x64xf32>
    %114 = vector.extract_strided_slice %111 {offsets = [0, 64], sizes = [2, 64], strides = [1, 1]} : vector<2x256xf32> to vector<2x64xf32>
    %115 = vector.extract_strided_slice %112 {offsets = [0, 128], sizes = [2, 64], strides = [1, 1]} : vector<2x256xf32> to vector<2x64xf32>
    %116 = vector.extract_strided_slice %111 {offsets = [0, 192], sizes = [2, 64], strides = [1, 1]} : vector<2x256xf32> to vector<2x64xf32>
    %117 = arith.mulf %114, %102 : vector<2x64xf32>
    %118 = arith.mulf %113, %115 : vector<2x64xf32>
    %119 = arith.addf %117, %118 : vector<2x64xf32>
    %120 = math.tanh %119 : vector<2x64xf32>
    %121 = arith.mulf %116, %120 : vector<2x64xf32>
    %cst_17 = arith.constant dense<0.000000e+00> : vector<2x256xf32>
    %122 = tpu.matmul %121, %6, %cst_17 {dimension_numbers = #tpu.dot_dimension_numbers<[1], [0], [0], [1], [0, 0, 1, 1], [], []>} : vector<2x64xf32>, vector<64x256xf32>, vector<2x256xf32> -> vector<2x256xf32>
    %123 = arith.addf %122, %24 : vector<2x256xf32>
    %124 = arith.negf %123 : vector<2x256xf32>
    %125 = math.exp %124 : vector<2x256xf32>
    %cst_18 = arith.constant 1.000000e+00 : f32
    %126 = vector.broadcast %cst_18 : f32 to vector<2x256xf32>
    %127 = arith.addf %126, %125 : vector<2x256xf32>
    %128 = arith.divf %126, %127 : vector<2x256xf32>
    %129 = math.tanh %123 : vector<2x256xf32>
    %130 = vector.extract_strided_slice %128 {offsets = [0, 0], sizes = [2, 64], strides = [1, 1]} : vector<2x256xf32> to vector<2x64xf32>
    %131 = vector.extract_strided_slice %128 {offsets = [0, 64], sizes = [2, 64], strides = [1, 1]} : vector<2x256xf32> to vector<2x64xf32>
    %132 = vector.extract_strided_slice %129 {offsets = [0, 128], sizes = [2, 64], strides = [1, 1]} : vector<2x256xf32> to vector<2x64xf32>
    %133 = vector.extract_strided_slice %128 {offsets = [0, 192], sizes = [2, 64], strides = [1, 1]} : vector<2x256xf32> to vector<2x64xf32>
    %134 = arith.mulf %131, %119 : vector<2x64xf32>
    %135 = arith.mulf %130, %132 : vector<2x64xf32>
    %136 = arith.addf %134, %135 : vector<2x64xf32>
    %137 = math.tanh %136 : vector<2x64xf32>
    %138 = arith.mulf %133, %137 : vector<2x64xf32>
    %cst_19 = arith.constant dense<0.000000e+00> : vector<2x256xf32>
    %139 = tpu.matmul %138, %6, %cst_19 {dimension_numbers = #tpu.dot_dimension_numbers<[1], [0], [0], [1], [0, 0, 1, 1], [], []>} : vector<2x64xf32>, vector<64x256xf32>, vector<2x256xf32> -> vector<2x256xf32>
    %140 = arith.addf %139, %27 : vector<2x256xf32>
    %141 = arith.negf %140 : vector<2x256xf32>
    %142 = math.exp %141 : vector<2x256xf32>
    %cst_20 = arith.constant 1.000000e+00 : f32
    %143 = vector.broadcast %cst_20 : f32 to vector<2x256xf32>
    %144 = arith.addf %143, %142 : vector<2x256xf32>
    %145 = arith.divf %143, %144 : vector<2x256xf32>
    %146 = math.tanh %140 : vector<2x256xf32>
    %147 = vector.extract_strided_slice %145 {offsets = [0, 0], sizes = [2, 64], strides = [1, 1]} : vector<2x256xf32> to vector<2x64xf32>
    %148 = vector.extract_strided_slice %145 {offsets = [0, 64], sizes = [2, 64], strides = [1, 1]} : vector<2x256xf32> to vector<2x64xf32>
    %149 = vector.extract_strided_slice %146 {offsets = [0, 128], sizes = [2, 64], strides = [1, 1]} : vector<2x256xf32> to vector<2x64xf32>
    %150 = vector.extract_strided_slice %145 {offsets = [0, 192], sizes = [2, 64], strides = [1, 1]} : vector<2x256xf32> to vector<2x64xf32>
    %151 = arith.mulf %148, %136 : vector<2x64xf32>
    %152 = arith.mulf %147, %149 : vector<2x64xf32>
    %153 = arith.addf %151, %152 : vector<2x64xf32>
    %154 = math.tanh %153 : vector<2x64xf32>
    %155 = arith.mulf %150, %154 : vector<2x64xf32>
    %cst_21 = arith.constant dense<0.000000e+00> : vector<2x256xf32>
    %156 = tpu.matmul %155, %6, %cst_21 {dimension_numbers = #tpu.dot_dimension_numbers<[1], [0], [0], [1], [0, 0, 1, 1], [], []>} : vector<2x64xf32>, vector<64x256xf32>, vector<2x256xf32> -> vector<2x256xf32>
    %157 = arith.addf %156, %30 : vector<2x256xf32>
    %158 = arith.negf %157 : vector<2x256xf32>
    %159 = math.exp %158 : vector<2x256xf32>
    %cst_22 = arith.constant 1.000000e+00 : f32
    %160 = vector.broadcast %cst_22 : f32 to vector<2x256xf32>
    %161 = arith.addf %160, %159 : vector<2x256xf32>
    %162 = arith.divf %160, %161 : vector<2x256xf32>
    %163 = math.tanh %157 : vector<2x256xf32>
    %164 = vector.extract_strided_slice %162 {offsets = [0, 0], sizes = [2, 64], strides = [1, 1]} : vector<2x256xf32> to vector<2x64xf32>
    %165 = vector.extract_strided_slice %162 {offsets = [0, 64], sizes = [2, 64], strides = [1, 1]} : vector<2x256xf32> to vector<2x64xf32>
    %166 = vector.extract_strided_slice %163 {offsets = [0, 128], sizes = [2, 64], strides = [1, 1]} : vector<2x256xf32> to vector<2x64xf32>
    %167 = vector.extract_strided_slice %162 {offsets = [0, 192], sizes = [2, 64], strides = [1, 1]} : vector<2x256xf32> to vector<2x64xf32>
    %168 = arith.mulf %165, %153 : vector<2x64xf32>
    %169 = arith.mulf %164, %166 : vector<2x64xf32>
    %170 = arith.addf %168, %169 : vector<2x64xf32>
    %171 = math.tanh %170 : vector<2x64xf32>
    %172 = arith.mulf %167, %171 : vector<2x64xf32>
    %cst_23 = arith.constant dense<0.000000e+00> : vector<2x256xf32>
    %173 = tpu.matmul %172, %6, %cst_23 {dimension_numbers = #tpu.dot_dimension_numbers<[1], [0], [0], [1], [0, 0, 1, 1], [], []>} : vector<2x64xf32>, vector<64x256xf32>, vector<2x256xf32> -> vector<2x256xf32>
    %174 = arith.addf %173, %9 : vector<2x256xf32>
    %175 = arith.negf %174 : vector<2x256xf32>
    %176 = math.exp %175 : vector<2x256xf32>
    %cst_24 = arith.constant 1.000000e+00 : f32
    %177 = vector.broadcast %cst_24 : f32 to vector<2x256xf32>
    %178 = arith.addf %177, %176 : vector<2x256xf32>
    %179 = arith.divf %177, %178 : vector<2x256xf32>
    %180 = math.tanh %174 : vector<2x256xf32>
    %181 = vector.extract_strided_slice %179 {offsets = [0, 0], sizes = [2, 64], strides = [1, 1]} : vector<2x256xf32> to vector<2x64xf32>
    %182 = vector.extract_strided_slice %179 {offsets = [0, 64], sizes = [2, 64], strides = [1, 1]} : vector<2x256xf32> to vector<2x64xf32>
    %183 = vector.extract_strided_slice %180 {offsets = [0, 128], sizes = [2, 64], strides = [1, 1]} : vector<2x256xf32> to vector<2x64xf32>
    %184 = vector.extract_strided_slice %179 {offsets = [0, 192], sizes = [2, 64], strides = [1, 1]} : vector<2x256xf32> to vector<2x64xf32>
    %185 = arith.mulf %182, %170 : vector<2x64xf32>
    %186 = arith.mulf %181, %183 : vector<2x64xf32>
    %187 = arith.addf %185, %186 : vector<2x64xf32>
    %188 = math.tanh %187 : vector<2x64xf32>
    %189 = arith.mulf %184, %188 : vector<2x64xf32>
    %190 = vector.extract_strided_slice %189 {offsets = [0, 32], sizes = [2, 32], strides = [1, 1]} : vector<2x64xf32> to vector<2x32xf32>
    %c0_25 = arith.constant 0 : index
    %c0_26 = arith.constant 0 : index
    %191 = vector.load %arg4[%c0_25, %c0_26] : memref<2x32xf32, #tpu.memory_space<vmem>>, vector<2x32xf32>
    tpu.vector_store %arg4[%c0_25, %c0_26], %190 {strides = array<i32>} : memref<2x32xf32, #tpu.memory_space<vmem>>, vector<2x32xf32>,
    return
  }
}

</mosaic_0001>

<llo_original>
// kernel: motion_extractor_forward.1
$region0: #{motion_extractor_forward.1}
  #allocation0 [shape = 'u32[]', space=smem, size = 0x4, offset = 0x4, fixed_abs, tag = 'smem constant byte address 0x4 - core index']
  #allocation1 [shape = 'u32[144,128]{1,0:T(1,128)}', space=vmem, size = 0x12000, scoped, tag = 'internal scratch']
  %s0 = inlined_call_operand.vmem [shape: f32[16,48], index: 0, kind: input, shape index: {}]
  %s1 = inlined_call_operand.vmem [shape: f32[48,256], index: 1, kind: input, shape index: {}]
  %s2 = inlined_call_operand.vmem [shape: f32[64,256], index: 2, kind: input, shape index: {}]
  %s3 = inlined_call_operand.vmem [shape: f32[1,256], index: 3, kind: input, shape index: {}]
  %s4 = inlined_call_operand.hbm [shape: f32[2,32], index: 4, kind: output, shape index: {}]
  %s5 = sld [smem:[#allocation0]]
  $region26: #{motion_extractor_forward.1} parent=0
    _
  %s7 = ssub.s32 1, %s5
  %s8 = scalar_select 0, %s7, %s5
  $region1: #{motion_extractor_forward.1} parent=0
    #allocation2 [shape = 'u8[1024]{0}', space=vmem, size = 0x400, scoped, tag = 'output window, operand 0, single buffered']
    #allocation3 [shape = 's32[1]{0}', space=sflag, size = 0x4, scoped, tag = 'scoped memory for motion_extractor_forward.1']
    %9 = vsyncpa [#allocation3], 0
    // Predicated region
    $region2: #{motion_extractor_forward.1} parent=1 // pred_check
      _
    $region3: #{motion_extractor_forward.1} parent=1 // pred_check_branch
      %11 = sbr.rel (0) target = $region5
    $region4: #{motion_extractor_forward.1} parent=1 // pred_region
      _
    $region5: #{motion_extractor_forward.1} parent=1 // pred_fallthru
      _
    // Predicated region
    $region6: #{motion_extractor_forward.1} parent=1 // pred_check
      _
    $region7: #{motion_extractor_forward.1} parent=1 // pred_check_branch
      %13 = sbr.rel (0) target = $region9
    $region8: #{motion_extractor_forward.1} parent=1 // pred_region
      _
    $region9: #{motion_extractor_forward.1} parent=1 // pred_fallthru
      _
    // Predicated region
    $region10: #{motion_extractor_forward.1} parent=1 // pred_check
      _
    $region11: #{motion_extractor_forward.1} parent=1 // pred_check_branch
      %15 = sbr.rel (0) target = $region13
    $region12: #{motion_extractor_forward.1} parent=1 // pred_region
      _
    $region13: #{motion_extractor_forward.1} parent=1 // pred_fallthru
      _
    // Predicated region
    $region14: #{motion_extractor_forward.1} parent=1 // pred_check
      _
    $region15: #{motion_extractor_forward.1} parent=1 // pred_check_branch
      %17 = sbr.rel (0) target = $region17
    $region16: #{motion_extractor_forward.1} parent=1 // pred_region
      _
    $region17: #{motion_extractor_forward.1} parent=1 // pred_fallthru
      _
    %v18 = vld [vmem:[%s0] sm:$0xff]
    %v19 = vld [vmem:[%s0 + $0x8] sm:$0xff]
    %v20 = vld [vmem:[%s1] sm:$0xff]
    %v21 = vld [vmem:[%s1 + $0x8] sm:$0xff]
    %v22 = vld [vmem:[%s1 + $0x10] sm:$0xff]
    %v23 = vld [vmem:[%s1 + $0x18] sm:$0xff]
    %v24 = vld [vmem:[%s1 + $0x20] sm:$0xff]
    %v25 = vld [vmem:[%s1 + $0x28] sm:$0xff]
    %v26 = vld [vmem:[%s1 + $0x30] sm:$0xff]
    %v27 = vld [vmem:[%s1 + $0x38] sm:$0xff]
    %v28 = vld [vmem:[%s1 + $0x40] sm:$0xff]
    %v29 = vld [vmem:[%s1 + $0x48] sm:$0xff]
    %v30 = vld [vmem:[%s1 + $0x50] sm:$0xff]
    %v31 = vld [vmem:[%s1 + $0x58] sm:$0xff]
    %v32 = vld [vmem:[%s3] sm:$0x3]
    %v34 = vlaneseq
    %v35 = vshrl.u32 %v34, 7
    %v36 = vsub.s32 0, %v35
    %v37 = vrot.slane %v32, %v36
    %v38 = vlaneseq
    %v39 = vshrl.u32 %v38, 7
    %v40 = vsub.s32 1, %v39
    %v41 = vrot.slane %v32, %v40
    %vm44 = vcmask 392192
    %v46 = vsel %vm44, %v18, 0
    %v49 = vsel %vm44, %v19, 0
    %51 = vmatprep.subr.mxu0 %v21
    %52 = vmatpush1.msra.mxu0 %v20
    %53 = vmatprep.subr.mxu0 %v23
    %54 = vmatpush1.msra.mxu0 %v22
    %55 = vmatprep.subr.mxu0 %v25
    %56 = vmatpush1.msra.mxu0 %v24
    %57 = vmatprep.subr.mxu0 %v27
    %58 = vmatpush1.msra.mxu0 %v26
    %59 = vmatprep.subr.mxu0 %v29
    %60 = vmatpush1.msra.mxu0 %v28
    %61 = vmatprep.subr.mxu0 %v31
    %62 = vmatpush1.msra.mxu0 %v30
    %63 = vmatprep.subr.mxu0 0.0
    %64 = vmatpush1.msra.mxu0 0.0
    %65 = vmatprep.subr.mxu0 0.0
    %66 = vmatpush1.msra.mxu0 0.0
    %67 = vmatprep.subr.mxu0 0.0
    %68 = vmatpush1.msra.mxu0 0.0
    %69 = vmatprep.subr.mxu0 0.0
    %70 = vmatpush1.msra.mxu0 0.0
    %71 = vmatprep.subr.mxu0 0.0
    %72 = vmatpush1.msra.mxu0 0.0
    %73 = vmatprep.subr.mxu0 0.0
    %74 = vmatpush1.msra.mxu0 0.0
    %75 = vmatprep.subr.mxu0 0.0
    %76 = vmatpush1.msra.mxu0 0.0
    %77 = vmatprep.subr.mxu0 0.0
    %78 = vmatpush1.msra.mxu0 0.0
    %79 = vmatprep.subr.mxu0 0.0
    %80 = vmatpush1.msra.mxu0 0.0
    %81 = vmatprep.subr.mxu0 0.0
    %82 = vmatpush1.msra.mxu0 0.0
    %83 = vmatprep.subr.mxu0 0.0
    %84 = vmatpush1.msra.mxu0 0.0
    %85 = vmatprep.subr.mxu0 0.0
    %86 = vmatpush1.msra.mxu0 0.0
    %87 = vmatprep.subr.mxu0 0.0
    %88 = vmatpush1.msra.mxu0 0.0
    %89 = vmatprep.subr.mxu0 0.0
    %90 = vmatpush1.msra.mxu0 0.0
    %91 = vmatprep.subr.mxu0 0.0
    %92 = vmatpush1.msra.mxu0 0.0
    %93 = vmatprep.subr.mxu0 0.0
    %94 = vmatpush1.msra.mxu0 0.0
    %95 = vmatprep.subr.mxu0 0.0
    %96 = vmatpush1.msra.mxu0 0.0
    %97 = vmatprep.subr.mxu0 0.0
    %98 = vmatpush1.msra.mxu0 0.0
    %99 = vmatprep.subr.mxu0 0.0
    %100 = vmatpush1.msra.mxu0 0.0
    %101 = vmatprep.subr.mxu0 0.0
    %102 = vmatpush1.msra.mxu0 0.0
    %103 = vmatprep.subr.mxu0 0.0
    %104 = vmatpush1.msra.mxu0 0.0
    %105 = vmatprep.subr.mxu0 0.0
    %106 = vmatpush1.msra.mxu0 0.0
    %107 = vmatprep.subr.mxu0 0.0
    %108 = vmatpush1.msra.mxu0 0.0
    %109 = vmatprep.subr.mxu0 0.0
    %110 = vmatpush1.msra.mxu0 0.0
    %111 = vmatprep.subr.mxu0 0.0
    %112 = vmatpush1.msra.mxu0 0.0
    %113 = vmatprep.subr.mxu0 0.0
    %114 = vmatpush1.msra.mxu0 0.0
    %115 = vmatprep.mubr.f32.mxu0 0.0
    %116 = vmatmul.mubr.f32.gmra.mrb[0].mxu0 %v46
    %v117 = vpop.f32.mrb[0].mxu0
    %v118 = vadd.f32 %v37, %v117
    %v119 = vpop.f32.mrb[0].mxu0
    %v120 = vadd.f32 %v41, %v119
    %121 = vmatprep.mubr.f32.mxu0 0.0
    %122 = vmatmul.mubr.f32.gmra.mrb[0].mxu0 %v49
    %v123 = vpop.f32.mrb[0].mxu0
    %v124 = vadd.f32 %v37, %v123
    %v125 = vpop.f32.mrb[0].mxu0
    %v126 = vadd.f32 %v41, %v125
    %127 = vdwg.mxu0
    %v128 = vld [vmem:[%s2] sm:$0xff]
    %v129 = vld [vmem:[%s2 + $0x8] sm:$0xff]
    %v130 = vld [vmem:[%s2 + $0x10] sm:$0xff]
    %v131 = vld [vmem:[%s2 + $0x18] sm:$0xff]
    %v132 = vld [vmem:[%s2 + $0x20] sm:$0xff]
    %v133 = vld [vmem:[%s2 + $0x28] sm:$0xff]
    %v134 = vld [vmem:[%s2 + $0x30] sm:$0xff]
    %v135 = vld [vmem:[%s2 + $0x38] sm:$0xff]
    %v136 = vld [vmem:[%s2 + $0x40] sm:$0xff]
    %v137 = vld [vmem:[%s2 + $0x48] sm:$0xff]
    %v138 = vld [vmem:[%s2 + $0x50] sm:$0xff]
    %v139 = vld [vmem:[%s2 + $0x58] sm:$0xff]
    %v140 = vld [vmem:[%s2 + $0x60] sm:$0xff]
    %v141 = vld [vmem:[%s2 + $0x68] sm:$0xff]
    %v142 = vld [vmem:[%s2 + $0x70] sm:$0xff]
    %v143 = vld [vmem:[%s2 + $0x78] sm:$0xff]
    %v146 = vrot.slane %v124, 7
    %v147 = vrot.slane %v126, 7
    %vm150 = vcmask 1040384
    %v151 = vsel %vm150, %v118, %v146
    %v152 = vsel %vm150, %v120, %v147
    %v155 = vrot.slane %v118, 1
    %v156 = vrot.slane %v120, 1
    %v159 = vsel %vm150, %v155, %v124
    %v160 = vsel %vm150, %v156, %v126
    %v161 = vrot.slane %v118, 2
    %v162 = vrot.slane %v120, 2
    %v165 = vrot.slane %v124, 1
    %v166 = vrot.slane %v126, 1
    %v169 = vsel %vm150, %v161, %v165
    %v170 = vsel %vm150, %v162, %v166
    %v171 = vrot.slane %v118, 3
    %v172 = vrot.slane %v120, 3
    %v175 = vrot.slane %v124, 2
    %v176 = vrot.slane %v126, 2
    %v179 = vsel %vm150, %v171, %v175
    %v180 = vsel %vm150, %v172, %v176
    %v181 = vrot.slane %v118, 4
    %v182 = vrot.slane %v120, 4
    %v185 = vrot.slane %v124, 3
    %v186 = vrot.slane %v126, 3
    %v189 = vsel %vm150, %v181, %v185
    %v190 = vsel %vm150, %v182, %v186
    %v191 = vrot.slane %v118, 5
    %v192 = vrot.slane %v120, 5
    %v195 = vrot.slane %v124, 4
    %v196 = vrot.slane %v126, 4
    %v199 = vsel %vm150, %v191, %v195
    %v200 = vsel %vm150, %v192, %v196
    %v201 = vrot.slane %v118, 6
    %v202 = vrot.slane %v120, 6
    %v205 = vrot.slane %v124, 5
    %v206 = vrot.slane %v126, 5
    %v209 = vsel %vm150, %v201, %v205
    %v210 = vsel %vm150, %v202, %v206
    %v211 = vrot.slane %v118, 7
    %v212 = vrot.slane %v120, 7
    %v215 = vrot.slane %v124, 6
    %v216 = vrot.slane %v126, 6
    %v219 = vsel %vm150, %v211, %v215
    %v220 = vsel %vm150, %v212, %v216
    %v221 = vlaneseq
    %v222 = vand.u32 %v221, 127
    %vm223 = vcmp.lt.s32.totalorder %v222, 32
    %v224 = vsel %vm223, 1, 0
    %v225 = vcvt.s32.f32 %v224
    %v226 = vxor.u32 %v151, 2147483648
    %v227 = vxor.u32 %v152, 2147483648
    %v228 = vmul.f32 %v226, 1.442695
    %v229 = vpow.pop %v228
    %v230 = vmul.f32 %v227, 1.442695
    %v231 = vpow.pop %v230
    %v232 = vadd.f32 %v229, 1.0
    %v233 = vadd.f32 %v231, 1.0
    %v234 = vrcp.pop %v232
    %v235 = vmul.f32 1.0, %v234
    %v236 = vrcp.pop %v233
    %v237 = vmul.f32 1.0, %v236
    %v238 = vtanh.pop %v152
    %v239 = vmul.f32 %v235, 0.0
    %v240 = vmul.f32 %v235, %v238
    %242 = vrot.lane.b32.xlu0 %v240, 64
    %v243 = vpop.permute.xlu0 %242
    %v245 = vadd.f32 %v239, %v243
    %v246 = vtanh.pop %v245
    %v247 = vmul.f32 %v237, %v246
    %249 = vrot.lane.b32.xlu0 %v225, 64
    %v250 = vpop.permute.xlu0 %249
    %v252 = vmul.f32 %v247, %v250
    %v253 = vmul.f32 %v245, %v250
    %255 = vrot.lane.b32.xlu0 %v252, 64
    %v256 = vpop.permute.xlu0 %255
    %vm257 = vcmask 523264
    %v258 = vsel %vm257, %v256, 0
    %260 = vmatprep.subr.mxu0 %v129
    %261 = vmatpush1.msra.mxu0 %v128
    %262 = vmatprep.subr.mxu0 %v131
    %263 = vmatpush1.msra.mxu0 %v130
    %264 = vmatprep.subr.mxu0 %v133
    %265 = vmatpush1.msra.mxu0 %v132
    %266 = vmatprep.subr.mxu0 %v135
    %267 = vmatpush1.msra.mxu0 %v134
    %268 = vmatprep.subr.mxu0 %v137
    %269 = vmatpush1.msra.mxu0 %v136
    %270 = vmatprep.subr.mxu0 %v139
    %271 = vmatpush1.msra.mxu0 %v138
    %272 = vmatprep.subr.mxu0 %v141
    %273 = vmatpush1.msra.mxu0 %v140
    %274 = vmatprep.subr.mxu0 %v143
    %275 = vmatpush1.msra.mxu0 %v142
    %276 = vmatprep.subr.mxu0 0.0
    %277 = vmatpush1.msra.mxu0 0.0
    %278 = vmatprep.subr.mxu0 0.0
    %279 = vmatpush1.msra.mxu0 0.0
    %280 = vmatprep.subr.mxu0 0.0
    %281 = vmatpush1.msra.mxu0 0.0
    %282 = vmatprep.subr.mxu0 0.0
    %283 = vmatpush1.msra.mxu0 0.0
    %284 = vmatprep.subr.mxu0 0.0
    %285 = vmatpush1.msra.mxu0 0.0
    %286 = vmatprep.subr.mxu0 0.0
    %287 = vmatpush1.msra.mxu0 0.0
    %288 = vmatprep.subr.mxu0 0.0
    %289 = vmatpush1.msra.mxu0 0.0
    %290 = vmatprep.subr.mxu0 0.0
    %291 = vmatpush1.msra.mxu0 0.0
    %292 = vmatprep.subr.mxu0 0.0
    %293 = vmatpush1.msra.mxu0 0.0
    %294 = vmatprep.subr.mxu0 0.0
    %295 = vmatpush1.msra.mxu0 0.0
    %296 = vmatprep.subr.mxu0 0.0
    %297 = vmatpush1.msra.mxu0 0.0
    %298 = vmatprep.subr.mxu0 0.0
    %299 = vmatpush1.msra.mxu0 0.0
    %300 = vmatprep.subr.mxu0 0.0
    %301 = vmatpush1.msra.mxu0 0.0
    %302 = vmatprep.subr.mxu0 0.0
    %303 = vmatpush1.msra.mxu0 0.0
    %304 = vmatprep.subr.mxu0 0.0
    %305 = vmatpush1.msra.mxu0 0.0
    %306 = vmatprep.subr.mxu0 0.0
    %307 = vmatpush1.msra.mxu0 0.0
    %308 = vmatprep.subr.mxu0 0.0
    %309 = vmatpush1.msra.mxu0 0.0
    %310 = vmatprep.subr.mxu0 0.0
    %311 = vmatpush1.msra.mxu0 0.0
    %312 = vmatprep.subr.mxu0 0.0
    %313 = vmatpush1.msra.mxu0 0.0
    %314 = vmatprep.subr.mxu0 0.0
    %315 = vmatpush1.msra.mxu0 0.0
    %316 = vmatprep.subr.mxu0 0.0
    %317 = vmatpush1.msra.mxu0 0.0
    %318 = vmatprep.subr.mxu0 0.0
    %319 = vmatpush1.msra.mxu0 0.0
    %320 = vmatprep.subr.mxu0 0.0
    %321 = vmatpush1.msra.mxu0 0.0
    %322 = vmatprep.subr.mxu0 0.0
    %323 = vmatpush1.msra.mxu0 0.0
    %324 = vmatprep.mubr.f32.mxu0 0.0
    %325 = vmatmul.mubr.f32.gmra.mrb[0].mxu0 %v258
    %v326 = vpop.f32.mrb[0].mxu0
    %v327 = vadd.f32 %v159, %v326
    %v328 = vpop.f32.mrb[0].mxu0
    %v329 = vadd.f32 %v160, %v328
    %330 = vdwg.mxu0
    %v331 = vxor.u32 %v327, 2147483648
    %v332 = vxor.u32 %v329, 2147483648
    %v333 = vmul.f32 %v331, 1.442695
    %v334 = vpow.pop %v333
    %v335 = vmul.f32 %v332, 1.442695
    %v336 = vpow.pop %v335
    %v337 = vadd.f32 %v334, 1.0
    %v338 = vadd.f32 %v336, 1.0
    %v339 = vrcp.pop %v337
    %v340 = vmul.f32 1.0, %v339
    %v341 = vrcp.pop %v338
    %v342 = vmul.f32 1.0, %v341
    %v343 = vtanh.pop %v329
    %v344 = vmul.f32 %v340, %v253
    %v345 = vmul.f32 %v340, %v343
    %347 = vrot.lane.b32.xlu0 %v345, 64
    %v348 = vpop.permute.xlu0 %347
    %v350 = vadd.f32 %v344, %v348
    %v351 = vtanh.pop %v350
    %v352 = vmul.f32 %v342, %v351
    %354 = vrot.lane.b32.xlu0 %v352, 64
    %v355 = vpop.permute.xlu0 %354
    %v356 = vsel %vm257, %v355, 0
    %358 = vmatprep.subr.mxu0 %v129
    %359 = vmatpush1.msra.mxu0 %v128
    %360 = vmatprep.subr.mxu0 %v131
    %361 = vmatpush1.msra.mxu0 %v130
    %362 = vmatprep.subr.mxu0 %v133
    %363 = vmatpush1.msra.mxu0 %v132
    %364 = vmatprep.subr.mxu0 %v135
    %365 = vmatpush1.msra.mxu0 %v134
    %366 = vmatprep.subr.mxu0 %v137
    %367 = vmatpush1.msra.mxu0 %v136
    %368 = vmatprep.subr.mxu0 %v139
    %369 = vmatpush1.msra.mxu0 %v138
    %370 = vmatprep.subr.mxu0 %v141
    %371 = vmatpush1.msra.mxu0 %v140
    %372 = vmatprep.subr.mxu0 %v143
    %373 = vmatpush1.msra.mxu0 %v142
    %374 = vmatprep.subr.mxu0 0.0
    %375 = vmatpush1.msra.mxu0 0.0
    %376 = vmatprep.subr.mxu0 0.0
    %377 = vmatpush1.msra.mxu0 0.0
    %378 = vmatprep.subr.mxu0 0.0
    %379 = vmatpush1.msra.mxu0 0.0
    %380 = vmatprep.subr.mxu0 0.0
    %381 = vmatpush1.msra.mxu0 0.0
    %382 = vmatprep.subr.mxu0 0.0
    %383 = vmatpush1.msra.mxu0 0.0
    %384 = vmatprep.subr.mxu0 0.0
    %385 = vmatpush1.msra.mxu0 0.0
    %386 = vmatprep.subr.mxu0 0.0
    %387 = vmatpush1.msra.mxu0 0.0
    %388 = vmatprep.subr.mxu0 0.0
    %389 = vmatpush1.msra.mxu0 0.0
    %390 = vmatprep.subr.mxu0 0.0
    %391 = vmatpush1.msra.mxu0 0.0
    %392 = vmatprep.subr.mxu0 0.0
    %393 = vmatpush1.msra.mxu0 0.0
    %394 = vmatprep.subr.mxu0 0.0
    %395 = vmatpush1.msra.mxu0 0.0
    %396 = vmatprep.subr.mxu0 0.0
    %397 = vmatpush1.msra.mxu0 0.0
    %398 = vmatprep.subr.mxu0 0.0
    %399 = vmatpush1.msra.mxu0 0.0
    %400 = vmatprep.subr.mxu0 0.0
    %401 = vmatpush1.msra.mxu0 0.0
    %402 = vmatprep.subr.mxu0 0.0
    %403 = vmatpush1.msra.mxu0 0.0
    %404 = vmatprep.subr.mxu0 0.0
    %405 = vmatpush1.msra.mxu0 0.0
    %406 = vmatprep.subr.mxu0 0.0
    %407 = vmatpush1.msra.mxu0 0.0
    %408 = vmatprep.subr.mxu0 0.0
    %409 = vmatpush1.msra.mxu0 0.0
    %410 = vmatprep.subr.mxu0 0.0
    %411 = vmatpush1.msra.mxu0 0.0
    %412 = vmatprep.subr.mxu0 0.0
    %413 = vmatpush1.msra.mxu0 0.0
    %414 = vmatprep.subr.mxu0 0.0
    %415 = vmatpush1.msra.mxu0 0.0
    %416 = vmatprep.subr.mxu0 0.0
    %417 = vmatpush1.msra.mxu0 0.0
    %418 = vmatprep.subr.mxu0 0.0
    %419 = vmatpush1.msra.mxu0 0.0
    %420 = vmatprep.subr.mxu0 0.0
    %421 = vmatpush1.msra.mxu0 0.0
    %422 = vmatprep.mubr.f32.mxu0 0.0
    %423 = vmatmul.mubr.f32.gmra.mrb[0].mxu0 %v356
    %v424 = vpop.f32.mrb[0].mxu0
    %v425 = vadd.f32 %v169, %v424
    %v426 = vpop.f32.mrb[0].mxu0
    %v427 = vadd.f32 %v170, %v426
    %428 = vdwg.mxu0
    %v429 = vxor.u32 %v425, 2147483648
    %v430 = vxor.u32 %v427, 2147483648
    %v431 = vmul.f32 %v429, 1.442695
    %v432 = vpow.pop %v431
    %v433 = vmul.f32 %v430, 1.442695
    %v434 = vpow.pop %v433
    %v435 = vadd.f32 %v432, 1.0
    %v436 = vadd.f32 %v434, 1.0
    %v437 = vrcp.pop %v435
    %v438 = vmul.f32 1.0, %v437
    %v439 = vrcp.pop %v436
    %v440 = vmul.f32 1.0, %v439
    %v441 = vtanh.pop %v427
    %v442 = vmul.f32 %v438, %v350
    %v443 = vmul.f32 %v438, %v441
    %445 = vrot.lane.b32.xlu0 %v443, 64
    %v446 = vpop.permute.xlu0 %445
    %v448 = vadd.f32 %v442, %v446
    %v449 = vtanh.pop %v448
    %v450 = vmul.f32 %v440, %v449
    %452 = vrot.lane.b32.xlu0 %v450, 64
    %v453 = vpop.permute.xlu0 %452
    %v454 = vsel %vm257, %v453, 0
    %456 = vmatprep.subr.mxu0 %v129
    %457 = vmatpush1.msra.mxu0 %v128
    %458 = vmatprep.subr.mxu0 %v131
    %459 = vmatpush1.msra.mxu0 %v130
    %460 = vmatprep.subr.mxu0 %v133
    %461 = vmatpush1.msra.mxu0 %v132
    %462 = vmatprep.subr.mxu0 %v135
    %463 = vmatpush1.msra.mxu0 %v134
    %464 = vmatprep.subr.mxu0 %v137
    %465 = vmatpush1.msra.mxu0 %v136
    %466 = vmatprep.subr.mxu0 %v139
    %467 = vmatpush1.msra.mxu0 %v138
    %468 = vmatprep.subr.mxu0 %v141
    %469 = vmatpush1.msra.mxu0 %v140
    %470 = vmatprep.subr.mxu0 %v143
    %471 = vmatpush1.msra.mxu0 %v142
    %472 = vmatprep.subr.mxu0 0.0
    %473 = vmatpush1.msra.mxu0 0.0
    %474 = vmatprep.subr.mxu0 0.0
    %475 = vmatpush1.msra.mxu0 0.0
    %476 = vmatprep.subr.mxu0 0.0
    %477 = vmatpush1.msra.mxu0 0.0
    %478 = vmatprep.subr.mxu0 0.0
    %479 = vmatpush1.msra.mxu0 0.0
    %480 = vmatprep.subr.mxu0 0.0
    %481 = vmatpush1.msra.mxu0 0.0
    %482 = vmatprep.subr.mxu0 0.0
    %483 = vmatpush1.msra.mxu0 0.0
    %484 = vmatprep.subr.mxu0 0.0
    %485 = vmatpush1.msra.mxu0 0.0
    %486 = vmatprep.subr.mxu0 0.0
    %487 = vmatpush1.msra.mxu0 0.0
    %488 = vmatprep.subr.mxu0 0.0
    %489 = vmatpush1.msra.mxu0 0.0
    %490 = vmatprep.subr.mxu0 0.0
    %491 = vmatpush1.msra.mxu0 0.0
    %492 = vmatprep.subr.mxu0 0.0
    %493 = vmatpush1.msra.mxu0 0.0
    %494 = vmatprep.subr.mxu0 0.0
    %495 = vmatpush1.msra.mxu0 0.0
    %496 = vmatprep.subr.mxu0 0.0
    %497 = vmatpush1.msra.mxu0 0.0
    %498 = vmatprep.subr.mxu0 0.0
    %499 = vmatpush1.msra.mxu0 0.0
    %500 = vmatprep.subr.mxu0 0.0
    %501 = vmatpush1.msra.mxu0 0.0
    %502 = vmatprep.subr.mxu0 0.0
    %503 = vmatpush1.msra.mxu0 0.0
    %504 = vmatprep.subr.mxu0 0.0
    %505 = vmatpush1.msra.mxu0 0.0
    %506 = vmatprep.subr.mxu0 0.0
    %507 = vmatpush1.msra.mxu0 0.0
    %508 = vmatprep.subr.mxu0 0.0
    %509 = vmatpush1.msra.mxu0 0.0
    %510 = vmatprep.subr.mxu0 0.0
    %511 = vmatpush1.msra.mxu0 0.0
    %512 = vmatprep.subr.mxu0 0.0
    %513 = vmatpush1.msra.mxu0 0.0
    %514 = vmatprep.subr.mxu0 0.0
    %515 = vmatpush1.msra.mxu0 0.0
    %516 = vmatprep.subr.mxu0 0.0
    %517 = vmatpush1.msra.mxu0 0.0
    %518 = vmatprep.subr.mxu0 0.0
    %519 = vmatpush1.msra.mxu0 0.0
    %520 = vmatprep.mubr.f32.mxu0 0.0
    %521 = vmatmul.mubr.f32.gmra.mrb[0].mxu0 %v454
    %v522 = vpop.f32.mrb[0].mxu0
    %v523 = vadd.f32 %v179, %v522
    %v524 = vpop.f32.mrb[0].mxu0
    %v525 = vadd.f32 %v180, %v524
    %526 = vdwg.mxu0
    %v527 = vxor.u32 %v523, 2147483648
    %v528 = vxor.u32 %v525, 2147483648
    %v529 = vmul.f32 %v527, 1.442695
    %v530 = vpow.pop %v529
    %v531 = vmul.f32 %v528, 1.442695
    %v532 = vpow.pop %v531
    %v533 = vadd.f32 %v530, 1.0
    %v534 = vadd.f32 %v532, 1.0
    %v535 = vrcp.pop %v533
    %v536 = vmul.f32 1.0, %v535
    %v537 = vrcp.pop %v534
    %v538 = vmul.f32 1.0, %v537
    %v539 = vtanh.pop %v525
    %v540 = vmul.f32 %v536, %v448
    %v541 = vmul.f32 %v536, %v539
    %543 = vrot.lane.b32.xlu0 %v541, 64
    %v544 = vpop.permute.xlu0 %543
    %v546 = vadd.f32 %v540, %v544
    %v547 = vtanh.pop %v546
    %v548 = vmul.f32 %v538, %v547
    %550 = vrot.lane.b32.xlu0 %v548, 64
    %v551 = vpop.permute.xlu0 %550
    %v552 = vsel %vm257, %v551, 0
    %554 = vmatprep.subr.mxu0 %v129
    %555 = vmatpush1.msra.mxu0 %v128
    %556 = vmatprep.subr.mxu0 %v131
    %557 = vmatpush1.msra.mxu0 %v130
    %558 = vmatprep.subr.mxu0 %v133
    %559 = vmatpush1.msra.mxu0 %v132
    %560 = vmatprep.subr.mxu0 %v135
    %561 = vmatpush1.msra.mxu0 %v134
    %562 = vmatprep.subr.mxu0 %v137
    %563 = vmatpush1.msra.mxu0 %v136
    %564 = vmatprep.subr.mxu0 %v139
    %565 = vmatpush1.msra.mxu0 %v138
    %566 = vmatprep.subr.mxu0 %v141
    %567 = vmatpush1.msra.mxu0 %v140
    %568 = vmatprep.subr.mxu0 %v143
    %569 = vmatpush1.msra.mxu0 %v142
    %570 = vmatprep.subr.mxu0 0.0
    %571 = vmatpush1.msra.mxu0 0.0
    %572 = vmatprep.subr.mxu0 0.0
    %573 = vmatpush1.msra.mxu0 0.0
    %574 = vmatprep.subr.mxu0 0.0
    %575 = vmatpush1.msra.mxu0 0.0
    %576 = vmatprep.subr.mxu0 0.0
    %577 = vmatpush1.msra.mxu0 0.0
    %578 = vmatprep.subr.mxu0 0.0
    %579 = vmatpush1.msra.mxu0 0.0
    %580 = vmatprep.subr.mxu0 0.0
    %581 = vmatpush1.msra.mxu0 0.0
    %582 = vmatprep.subr.mxu0 0.0
    %583 = vmatpush1.msra.mxu0 0.0
    %584 = vmatprep.subr.mxu0 0.0
    %585 = vmatpush1.msra.mxu0 0.0
    %586 = vmatprep.subr.mxu0 0.0
    %587 = vmatpush1.msra.mxu0 0.0
    %588 = vmatprep.subr.mxu0 0.0
    %589 = vmatpush1.msra.mxu0 0.0
    %590 = vmatprep.subr.mxu0 0.0
    %591 = vmatpush1.msra.mxu0 0.0
    %592 = vmatprep.subr.mxu0 0.0
    %593 = vmatpush1.msra.mxu0 0.0
    %594 = vmatprep.subr.mxu0 0.0
    %595 = vmatpush1.msra.mxu0 0.0
    %596 = vmatprep.subr.mxu0 0.0
    %597 = vmatpush1.msra.mxu0 0.0
    %598 = vmatprep.subr.mxu0 0.0
    %599 = vmatpush1.msra.mxu0 0.0
    %600 = vmatprep.subr.mxu0 0.0
    %601 = vmatpush1.msra.mxu0 0.0
    %602 = vmatprep.subr.mxu0 0.0
    %603 = vmatpush1.msra.mxu0 0.0
    %604 = vmatprep.subr.mxu0 0.0
    %605 = vmatpush1.msra.mxu0 0.0
    %606 = vmatprep.subr.mxu0 0.0
    %607 = vmatpush1.msra.mxu0 0.0
    %608 = vmatprep.subr.mxu0 0.0
    %609 = vmatpush1.msra.mxu0 0.0
    %610 = vmatprep.subr.mxu0 0.0
    %611 = vmatpush1.msra.mxu0 0.0
    %612 = vmatprep.subr.mxu0 0.0
    %613 = vmatpush1.msra.mxu0 0.0
    %614 = vmatprep.subr.mxu0 0.0
    %615 = vmatpush1.msra.mxu0 0.0
    %616 = vmatprep.subr.mxu0 0.0
    %617 = vmatpush1.msra.mxu0 0.0
    %618 = vmatprep.mubr.f32.mxu0 0.0
    %619 = vmatmul.mubr.f32.gmra.mrb[0].mxu0 %v552
    %v620 = vpop.f32.mrb[0].mxu0
    %v621 = vadd.f32 %v189, %v620
    %v622 = vpop.f32.mrb[0].mxu0
    %v623 = vadd.f32 %v190, %v622
    %624 = vdwg.mxu0
    %v625 = vxor.u32 %v621, 2147483648
    %v626 = vxor.u32 %v623, 2147483648
    %v627 = vmul.f32 %v625, 1.442695
    %v628 = vpow.pop %v627
    %v629 = vmul.f32 %v626, 1.442695
    %v630 = vpow.pop %v629
    %v631 = vadd.f32 %v628, 1.0
    %v632 = vadd.f32 %v630, 1.0
    %v633 = vrcp.pop %v631
    %v634 = vmul.f32 1.0, %v633
    %v635 = vrcp.pop %v632
    %v636 = vmul.f32 1.0, %v635
    %v637 = vtanh.pop %v623
    %v638 = vmul.f32 %v634, %v546
    %v639 = vmul.f32 %v634, %v637
    %641 = vrot.lane.b32.xlu0 %v639, 64
    %v642 = vpop.permute.xlu0 %641
    %v644 = vadd.f32 %v638, %v642
    %v645 = vtanh.pop %v644
    %v646 = vmul.f32 %v636, %v645
    %648 = vrot.lane.b32.xlu0 %v646, 64
    %v649 = vpop.permute.xlu0 %648
    %v650 = vsel %vm257, %v649, 0
    %652 = vmatprep.subr.mxu0 %v129
    %653 = vmatpush1.msra.mxu0 %v128
    %654 = vmatprep.subr.mxu0 %v131
    %655 = vmatpush1.msra.mxu0 %v130
    %656 = vmatprep.subr.mxu0 %v133
    %657 = vmatpush1.msra.mxu0 %v132
    %658 = vmatprep.subr.mxu0 %v135
    %659 = vmatpush1.msra.mxu0 %v134
    %660 = vmatprep.subr.mxu0 %v137
    %661 = vmatpush1.msra.mxu0 %v136
    %662 = vmatprep.subr.mxu0 %v139
    %663 = vmatpush1.msra.mxu0 %v138
    %664 = vmatprep.subr.mxu0 %v141
    %665 = vmatpush1.msra.mxu0 %v140
    %666 = vmatprep.subr.mxu0 %v143
    %667 = vmatpush1.msra.mxu0 %v142
    %668 = vmatprep.subr.mxu0 0.0
    %669 = vmatpush1.msra.mxu0 0.0
    %670 = vmatprep.subr.mxu0 0.0
    %671 = vmatpush1.msra.mxu0 0.0
    %672 = vmatprep.subr.mxu0 0.0
    %673 = vmatpush1.msra.mxu0 0.0
    %674 = vmatprep.subr.mxu0 0.0
    %675 = vmatpush1.msra.mxu0 0.0
    %676 = vmatprep.subr.mxu0 0.0
    %677 = vmatpush1.msra.mxu0 0.0
    %678 = vmatprep.subr.mxu0 0.0
    %679 = vmatpush1.msra.mxu0 0.0
    %680 = vmatprep.subr.mxu0 0.0
    %681 = vmatpush1.msra.mxu0 0.0
    %682 = vmatprep.subr.mxu0 0.0
    %683 = vmatpush1.msra.mxu0 0.0
    %684 = vmatprep.subr.mxu0 0.0
    %685 = vmatpush1.msra.mxu0 0.0
    %686 = vmatprep.subr.mxu0 0.0
    %687 = vmatpush1.msra.mxu0 0.0
    %688 = vmatprep.subr.mxu0 0.0
    %689 = vmatpush1.msra.mxu0 0.0
    %690 = vmatprep.subr.mxu0 0.0
    %691 = vmatpush1.msra.mxu0 0.0
    %692 = vmatprep.subr.mxu0 0.0
    %693 = vmatpush1.msra.mxu0 0.0
    %694 = vmatprep.subr.mxu0 0.0
    %695 = vmatpush1.msra.mxu0 0.0
    %696 = vmatprep.subr.mxu0 0.0
    %697 = vmatpush1.msra.mxu0 0.0
    %698 = vmatprep.subr.mxu0 0.0
    %699 = vmatpush1.msra.mxu0 0.0
    %700 = vmatprep.subr.mxu0 0.0
    %701 = vmatpush1.msra.mxu0 0.0
    %702 = vmatprep.subr.mxu0 0.0
    %703 = vmatpush1.msra.mxu0 0.0
    %704 = vmatprep.subr.mxu0 0.0
    %705 = vmatpush1.msra.mxu0 0.0
    %706 = vmatprep.subr.mxu0 0.0
    %707 = vmatpush1.msra.mxu0 0.0
    %708 = vmatprep.subr.mxu0 0.0
    %709 = vmatpush1.msra.mxu0 0.0
    %710 = vmatprep.subr.mxu0 0.0
    %711 = vmatpush1.msra.mxu0 0.0
    %712 = vmatprep.subr.mxu0 0.0
    %713 = vmatpush1.msra.mxu0 0.0
    %714 = vmatprep.subr.mxu0 0.0
    %715 = vmatpush1.msra.mxu0 0.0
    %716 = vmatprep.mubr.f32.mxu0 0.0
    %717 = vmatmul.mubr.f32.gmra.mrb[0].mxu0 %v650
    %v718 = vpop.f32.mrb[0].mxu0
    %v719 = vadd.f32 %v199, %v718
    %v720 = vpop.f32.mrb[0].mxu0
    %v721 = vadd.f32 %v200, %v720
    %722 = vdwg.mxu0
    %v723 = vxor.u32 %v719, 2147483648
    %v724 = vxor.u32 %v721, 2147483648
    %v725 = vmul.f32 %v723, 1.442695
    %v726 = vpow.pop %v725
    %v727 = vmul.f32 %v724, 1.442695
    %v728 = vpow.pop %v727
    %v729 = vadd.f32 %v726, 1.0
    %v730 = vadd.f32 %v728, 1.0
    %v731 = vrcp.pop %v729
    %v732 = vmul.f32 1.0, %v731
    %v733 = vrcp.pop %v730
    %v734 = vmul.f32 1.0, %v733
    %v735 = vtanh.pop %v721
    %v736 = vmul.f32 %v732, %v644
    %v737 = vmul.f32 %v732, %v735
    %739 = vrot.lane.b32.xlu0 %v737, 64
    %v740 = vpop.permute.xlu0 %739
    %v742 = vadd.f32 %v736, %v740
    %v743 = vtanh.pop %v742
    %v744 = vmul.f32 %v734, %v743
    %746 = vrot.lane.b32.xlu0 %v744, 64
    %v747 = vpop.permute.xlu0 %746
    %v748 = vsel %vm257, %v747, 0
    %750 = vmatprep.subr.mxu0 %v129
    %751 = vmatpush1.msra.mxu0 %v128
    %752 = vmatprep.subr.mxu0 %v131
    %753 = vmatpush1.msra.mxu0 %v130
    %754 = vmatprep.subr.mxu0 %v133
    %755 = vmatpush1.msra.mxu0 %v132
    %756 = vmatprep.subr.mxu0 %v135
    %757 = vmatpush1.msra.mxu0 %v134
    %758 = vmatprep.subr.mxu0 %v137
    %759 = vmatpush1.msra.mxu0 %v136
    %760 = vmatprep.subr.mxu0 %v139
    %761 = vmatpush1.msra.mxu0 %v138
    %762 = vmatprep.subr.mxu0 %v141
    %763 = vmatpush1.msra.mxu0 %v140
    %764 = vmatprep.subr.mxu0 %v143
    %765 = vmatpush1.msra.mxu0 %v142
    %766 = vmatprep.subr.mxu0 0.0
    %767 = vmatpush1.msra.mxu0 0.0
    %768 = vmatprep.subr.mxu0 0.0
    %769 = vmatpush1.msra.mxu0 0.0
    %770 = vmatprep.subr.mxu0 0.0
    %771 = vmatpush1.msra.mxu0 0.0
    %772 = vmatprep.subr.mxu0 0.0
    %773 = vmatpush1.msra.mxu0 0.0
    %774 = vmatprep.subr.mxu0 0.0
    %775 = vmatpush1.msra.mxu0 0.0
    %776 = vmatprep.subr.mxu0 0.0
    %777 = vmatpush1.msra.mxu0 0.0
    %778 = vmatprep.subr.mxu0 0.0
    %779 = vmatpush1.msra.mxu0 0.0
    %780 = vmatprep.subr.mxu0 0.0
    %781 = vmatpush1.msra.mxu0 0.0
    %782 = vmatprep.subr.mxu0 0.0
    %783 = vmatpush1.msra.mxu0 0.0
    %784 = vmatprep.subr.mxu0 0.0
    %785 = vmatpush1.msra.mxu0 0.0
    %786 = vmatprep.subr.mxu0 0.0
    %787 = vmatpush1.msra.mxu0 0.0
    %788 = vmatprep.subr.mxu0 0.0
    %789 = vmatpush1.msra.mxu0 0.0
    %790 = vmatprep.subr.mxu0 0.0
    %791 = vmatpush1.msra.mxu0 0.0
    %792 = vmatprep.subr.mxu0 0.0
    %793 = vmatpush1.msra.mxu0 0.0
    %794 = vmatprep.subr.mxu0 0.0
    %795 = vmatpush1.msra.mxu0 0.0
    %796 = vmatprep.subr.mxu0 0.0
    %797 = vmatpush1.msra.mxu0 0.0
    %798 = vmatprep.subr.mxu0 0.0
    %799 = vmatpush1.msra.mxu0 0.0
    %800 = vmatprep.subr.mxu0 0.0
    %801 = vmatpush1.msra.mxu0 0.0
    %802 = vmatprep.subr.mxu0 0.0
    %803 = vmatpush1.msra.mxu0 0.0
    %804 = vmatprep.subr.mxu0 0.0
    %805 = vmatpush1.msra.mxu0 0.0
    %806 = vmatprep.subr.mxu0 0.0
    %807 = vmatpush1.msra.mxu0 0.0
    %808 = vmatprep.subr.mxu0 0.0
    %809 = vmatpush1.msra.mxu0 0.0
    %810 = vmatprep.subr.mxu0 0.0
    %811 = vmatpush1.msra.mxu0 0.0
    %812 = vmatprep.subr.mxu0 0.0
    %813 = vmatpush1.msra.mxu0 0.0
    %814 = vmatprep.mubr.f32.mxu0 0.0
    %815 = vmatmul.mubr.f32.gmra.mrb[0].mxu0 %v748
    %v816 = vpop.f32.mrb[0].mxu0
    %v817 = vadd.f32 %v209, %v816
    %v818 = vpop.f32.mrb[0].mxu0
    %v819 = vadd.f32 %v210, %v818
    %820 = vdwg.mxu0
    %v821 = vxor.u32 %v817, 2147483648
    %v822 = vxor.u32 %v819, 2147483648
    %v823 = vmul.f32 %v821, 1.442695
    %v824 = vpow.pop %v823
    %v825 = vmul.f32 %v822, 1.442695
    %v826 = vpow.pop %v825
    %v827 = vadd.f32 %v824, 1.0
    %v828 = vadd.f32 %v826, 1.0
    %v829 = vrcp.pop %v827
    %v830 = vmul.f32 1.0, %v829
    %v831 = vrcp.pop %v828
    %v832 = vmul.f32 1.0, %v831
    %v833 = vtanh.pop %v819
    %v834 = vmul.f32 %v830, %v742
    %v835 = vmul.f32 %v830, %v833
    %837 = vrot.lane.b32.xlu0 %v835, 64
    %v838 = vpop.permute.xlu0 %837
    %v840 = vadd.f32 %v834, %v838
    %v841 = vtanh.pop %v840
    %v842 = vmul.f32 %v832, %v841
    %844 = vrot.lane.b32.xlu0 %v842, 64
    %v845 = vpop.permute.xlu0 %844
    %v846 = vsel %vm257, %v845, 0
    %848 = vmatprep.subr.mxu0 %v129
    %849 = vmatpush1.msra.mxu0 %v128
    %850 = vmatprep.subr.mxu0 %v131
    %851 = vmatpush1.msra.mxu0 %v130
    %852 = vmatprep.subr.mxu0 %v133
    %853 = vmatpush1.msra.mxu0 %v132
    %854 = vmatprep.subr.mxu0 %v135
    %855 = vmatpush1.msra.mxu0 %v134
    %856 = vmatprep.subr.mxu0 %v137
    %857 = vmatpush1.msra.mxu0 %v136
    %858 = vmatprep.subr.mxu0 %v139
    %859 = vmatpush1.msra.mxu0 %v138
    %860 = vmatprep.subr.mxu0 %v141
    %861 = vmatpush1.msra.mxu0 %v140
    %862 = vmatprep.subr.mxu0 %v143
    %863 = vmatpush1.msra.mxu0 %v142
    %864 = vmatprep.subr.mxu0 0.0
    %865 = vmatpush1.msra.mxu0 0.0
    %866 = vmatprep.subr.mxu0 0.0
    %867 = vmatpush1.msra.mxu0 0.0
    %868 = vmatprep.subr.mxu0 0.0
    %869 = vmatpush1.msra.mxu0 0.0
    %870 = vmatprep.subr.mxu0 0.0
    %871 = vmatpush1.msra.mxu0 0.0
    %872 = vmatprep.subr.mxu0 0.0
    %873 = vmatpush1.msra.mxu0 0.0
    %874 = vmatprep.subr.mxu0 0.0
    %875 = vmatpush1.msra.mxu0 0.0
    %876 = vmatprep.subr.mxu0 0.0
    %877 = vmatpush1.msra.mxu0 0.0
    %878 = vmatprep.subr.mxu0 0.0
    %879 = vmatpush1.msra.mxu0 0.0
    %880 = vmatprep.subr.mxu0 0.0
    %881 = vmatpush1.msra.mxu0 0.0
    %882 = vmatprep.subr.mxu0 0.0
    %883 = vmatpush1.msra.mxu0 0.0
    %884 = vmatprep.subr.mxu0 0.0
    %885 = vmatpush1.msra.mxu0 0.0
    %886 = vmatprep.subr.mxu0 0.0
    %887 = vmatpush1.msra.mxu0 0.0
    %888 = vmatprep.subr.mxu0 0.0
    %889 = vmatpush1.msra.mxu0 0.0
    %890 = vmatprep.subr.mxu0 0.0
    %891 = vmatpush1.msra.mxu0 0.0
    %892 = vmatprep.subr.mxu0 0.0
    %893 = vmatpush1.msra.mxu0 0.0
    %894 = vmatprep.subr.mxu0 0.0
    %895 = vmatpush1.msra.mxu0 0.0
    %896 = vmatprep.subr.mxu0 0.0
    %897 = vmatpush1.msra.mxu0 0.0
    %898 = vmatprep.subr.mxu0 0.0
    %899 = vmatpush1.msra.mxu0 0.0
    %900 = vmatprep.subr.mxu0 0.0
    %901 = vmatpush1.msra.mxu0 0.0
    %902 = vmatprep.subr.mxu0 0.0
    %903 = vmatpush1.msra.mxu0 0.0
    %904 = vmatprep.subr.mxu0 0.0
    %905 = vmatpush1.msra.mxu0 0.0
    %906 = vmatprep.subr.mxu0 0.0
    %907 = vmatpush1.msra.mxu0 0.0
    %908 = vmatprep.subr.mxu0 0.0
    %909 = vmatpush1.msra.mxu0 0.0
    %910 = vmatprep.subr.mxu0 0.0
    %911 = vmatpush1.msra.mxu0 0.0
    %912 = vmatprep.mubr.f32.mxu0 0.0
    %913 = vmatmul.mubr.f32.gmra.mrb[0].mxu0 %v846
    %v914 = vpop.f32.mrb[0].mxu0
    %v915 = vadd.f32 %v219, %v914
    %v916 = vpop.f32.mrb[0].mxu0
    %v917 = vadd.f32 %v220, %v916
    %918 = vdwg.mxu0
    %v919 = vxor.u32 %v915, 2147483648
    %v920 = vxor.u32 %v917, 2147483648
    %v921 = vmul.f32 %v919, 1.442695
    %v922 = vpow.pop %v921
    %v923 = vmul.f32 %v920, 1.442695
    %v924 = vpow.pop %v923
    %v925 = vadd.f32 %v922, 1.0
    %v926 = vadd.f32 %v924, 1.0
    %v927 = vrcp.pop %v925
    %v928 = vmul.f32 1.0, %v927
    %v929 = vrcp.pop %v926
    %v930 = vmul.f32 1.0, %v929
    %v931 = vtanh.pop %v917
    %v932 = vmul.f32 %v928, %v840
    %v933 = vmul.f32 %v928, %v931
    %935 = vrot.lane.b32.xlu0 %v933, 64
    %v936 = vpop.permute.xlu0 %935
    %v938 = vadd.f32 %v932, %v936
    %v939 = vtanh.pop %v938
    %v940 = vmul.f32 %v930, %v939
    %942 = vrot.lane.b32.xlu0 %v940, 64
    %v943 = vpop.permute.xlu0 %942
    %v944 = vsel %vm257, %v943, 0
    %946 = vmatprep.subr.mxu0 %v129
    %947 = vmatpush1.msra.mxu0 %v128
    %948 = vmatprep.subr.mxu0 %v131
    %949 = vmatpush1.msra.mxu0 %v130
    %950 = vmatprep.subr.mxu0 %v133
    %951 = vmatpush1.msra.mxu0 %v132
    %952 = vmatprep.subr.mxu0 %v135
    %953 = vmatpush1.msra.mxu0 %v134
    %954 = vmatprep.subr.mxu0 %v137
    %955 = vmatpush1.msra.mxu0 %v136
    %956 = vmatprep.subr.mxu0 %v139
    %957 = vmatpush1.msra.mxu0 %v138
    %958 = vmatprep.subr.mxu0 %v141
    %959 = vmatpush1.msra.mxu0 %v140
    %960 = vmatprep.subr.mxu0 %v143
    %961 = vmatpush1.msra.mxu0 %v142
    %962 = vmatprep.subr.mxu0 0.0
    %963 = vmatpush1.msra.mxu0 0.0
    %964 = vmatprep.subr.mxu0 0.0
    %965 = vmatpush1.msra.mxu0 0.0
    %966 = vmatprep.subr.mxu0 0.0
    %967 = vmatpush1.msra.mxu0 0.0
    %968 = vmatprep.subr.mxu0 0.0
    %969 = vmatpush1.msra.mxu0 0.0
    %970 = vmatprep.subr.mxu0 0.0
    %971 = vmatpush1.msra.mxu0 0.0
    %972 = vmatprep.subr.mxu0 0.0
    %973 = vmatpush1.msra.mxu0 0.0
    %974 = vmatprep.subr.mxu0 0.0
    %975 = vmatpush1.msra.mxu0 0.0
    %976 = vmatprep.subr.mxu0 0.0
    %977 = vmatpush1.msra.mxu0 0.0
    %978 = vmatprep.subr.mxu0 0.0
    %979 = vmatpush1.msra.mxu0 0.0
    %980 = vmatprep.subr.mxu0 0.0
    %981 = vmatpush1.msra.mxu0 0.0
    %982 = vmatprep.subr.mxu0 0.0
    %983 = vmatpush1.msra.mxu0 0.0
    %984 = vmatprep.subr.mxu0 0.0
    %985 = vmatpush1.msra.mxu0 0.0
    %986 = vmatprep.subr.mxu0 0.0
    %987 = vmatpush1.msra.mxu0 0.0
    %988 = vmatprep.subr.mxu0 0.0
    %989 = vmatpush1.msra.mxu0 0.0
    %990 = vmatprep.subr.mxu0 0.0
    %991 = vmatpush1.msra.mxu0 0.0
    %992 = vmatprep.subr.mxu0 0.0
    %993 = vmatpush1.msra.mxu0 0.0
    %994 = vmatprep.subr.mxu0 0.0
    %995 = vmatpush1.msra.mxu0 0.0
    %996 = vmatprep.subr.mxu0 0.0
    %997 = vmatpush1.msra.mxu0 0.0
    %998 = vmatprep.subr.mxu0 0.0
    %999 = vmatpush1.msra.mxu0 0.0
    %1000 = vmatprep.subr.mxu0 0.0
    %1001 = vmatpush1.msra.mxu0 0.0
    %1002 = vmatprep.subr.mxu0 0.0
    %1003 = vmatpush1.msra.mxu0 0.0
    %1004 = vmatprep.subr.mxu0 0.0
    %1005 = vmatpush1.msra.mxu0 0.0
    %1006 = vmatprep.subr.mxu0 0.0
    %1007 = vmatpush1.msra.mxu0 0.0
    %1008 = vmatprep.subr.mxu0 0.0
    %1009 = vmatpush1.msra.mxu0 0.0
    %1010 = vmatprep.mubr.f32.mxu0 0.0
    %1011 = vmatmul.mubr.f32.gmra.mrb[0].mxu0 %v944
    %v1012 = vpop.f32.mrb[0].mxu0
    %v1013 = vadd.f32 %v151, %v1012
    %v1014 = vpop.f32.mrb[0].mxu0
    %v1015 = vadd.f32 %v152, %v1014
    %1016 = vdwg.mxu0
    %v1017 = vxor.u32 %v1013, 2147483648
    %v1018 = vxor.u32 %v1015, 2147483648
    %v1019 = vmul.f32 %v1017, 1.442695
    %v1020 = vpow.pop %v1019
    %v1021 = vmul.f32 %v1018, 1.442695
    %v1022 = vpow.pop %v1021
    %v1023 = vadd.f32 %v1020, 1.0
    %v1024 = vadd.f32 %v1022, 1.0
    %v1025 = vrcp.pop %v1023
    %v1026 = vmul.f32 1.0, %v1025
    %v1027 = vrcp.pop %v1024
    %v1028 = vmul.f32 1.0, %v1027
    %v1029 = vtanh.pop %v1015
    %v1030 = vmul.f32 %v1026, %v938
    %v1031 = vmul.f32 %v1026, %v1029
    %1033 = vrot.lane.b32.xlu0 %v1031, 64
    %v1034 = vpop.permute.xlu0 %1033
    %v1036 = vadd.f32 %v1030, %v1034
    %v1037 = vtanh.pop %v1036
    %v1038 = vmul.f32 %v1028, %v1037
    %1040 = vrot.lane.b32.xlu0 %v1038, 32
    %v1041 = vpop.permute.xlu0 %1040
    %vm1043 = vcmask 254976
    %1044 = vst.msk [vmem:[#allocation2] sm:$0x3] %vm1043, %v1041
    // Predicated region
    $region18: #{motion_extractor_forward.1} parent=1 // pred_check
      _
    $region19: #{motion_extractor_forward.1} parent=1 // pred_check_branch
      %1046 = sbr.rel (0) target = $region21
    $region20: #{motion_extractor_forward.1} parent=1 // pred_region
      %s1048 = ssub.s32 32, 32
      %1049 = vsyncadd [#allocation3], %s1048
      %s1051 = sshll.u32 [#allocation2], 4
      %s1052 = int_to_ptr.vmem [resolvable:$true] %s1051
      %1054 = dma.vmem_to_hbm [thread:$0]  %s1052, 32, %s4, [#allocation3]
    $region21: #{motion_extractor_forward.1} parent=1 // pred_fallthru
      _
    // Predicated region
    $region22: #{motion_extractor_forward.1} parent=1 // pred_check
      _
    $region23: #{motion_extractor_forward.1} parent=1 // pred_check_branch
      %1056 = sbr.rel (0) target = $region25
    $region24: #{motion_extractor_forward.1} parent=1 // pred_region
      %1057 = dma.done [#allocation3], 32
    $region25: #{motion_extractor_forward.1} parent=1 // pred_fallthru
      _
    %1058 = vsyncpa [#allocation3], 1

</llo_original>
